<compile_context>
chip_gen: v5e
topology: v5e:2x2
jax: 0.10.0
libtpu: 0.0.40
codegen_flags: <defaults>
</compile_context>

<pallas_src>
import functools

import jax
import jax.numpy as jnp
from jax.experimental import pallas as pl
from jax.experimental.pallas import tpu as pltpu


def _circular_pad_kernel(x_ref, o_ref, *, pad, H, W):
    """One block of (Cb, H, W) planes -> (Cb, H_out, W_out) planes.

    All padding amounts are static Python ints, so the store pattern is fixed
    at trace time.
    """
    pl_, pr, pt, pb = pad

    # Interior slab: the single biggest (lane/sublane-dense) copy.
    o_ref[:, pt:pt + H, pl_:pl_ + W] = x_ref[...]

    # Left / right wrap columns over the interior rows (thin stores).
    if pl_ > 0:
        o_ref[:, pt:pt + H, 0:pl_] = x_ref[:, :, W - pl_:]
    if pr > 0:
        o_ref[:, pt:pt + H, pl_ + W:] = x_ref[:, :, 0:pr]

    def _full_width(rows):
        # rows: (Cb, r, W) -> (Cb, r, W_out) with circular wrap along W.
        parts = []
        if pl_ > 0:
            parts.append(rows[:, :, W - pl_:])
        parts.append(rows)
        if pr > 0:
            parts.append(rows[:, :, 0:pr])
        if len(parts) == 1:
            return rows
        return jnp.concatenate(parts, axis=-1)

    # Top band (wrapped from the bottom rows of x), corners included:
    # one full-output-width store.
    if pt > 0:
        o_ref[:, 0:pt, :] = _full_width(x_ref[:, H - pt:, :])

    # Bottom band (wrapped from the top rows of x), corners included.
    if pb > 0:
        o_ref[:, pt + H:, :] = _full_width(x_ref[:, 0:pb, :])


def circular_pad2d(x, padding=(1, 1, 1, 1)):
    """Circular pad an NCHW tensor. `padding` = (left, right, top, bottom)."""
    if isinstance(padding, int):
        padding = (padding,) * 4
    padding = tuple(int(p) for p in padding)
    pl_, pr, pt, pb = padding
    N, C, H, W = x.shape
    assert pl_ <= W and pr <= W and pt <= H and pb <= H, (
        "circular padding size must not exceed the corresponding input dim")

    if pl_ == 0 and pr == 0 and pt == 0 and pb == 0:
        return x

    H_out = H + pt + pb
    W_out = W + pl_ + pr

    # Collapse N and C: the op is identical per plane, so tile over planes.
    NC = N * C
    xf = x.reshape(NC, H, W)

    # Choose how many planes to move per grid step so each step streams a few
    # MiB (amortizes per-step overhead) while the double-buffered working set
    # stays well inside VMEM on all generations (v7x: 64 MiB physical).
    itemsize = jnp.dtype(x.dtype).itemsize
    bytes_per_plane = (H * W + H_out * W_out) * itemsize
    target_bytes_per_step = 8 * 1024 * 1024  # in + out per step (single buffer)
    cb = max(1, min(NC, target_bytes_per_step // max(1, bytes_per_plane)))
    if NC >= 2:
        # Keep at least 2 grid steps so both v7x TensorCores get work.
        cb = min(cb, pl.cdiv(NC, 2))
    num_blocks = pl.cdiv(NC, cb)

    kernel = functools.partial(_circular_pad_kernel, pad=padding, H=H, W=W)

    out = pl.pallas_call(
        kernel,
        out_shape=jax.ShapeDtypeStruct((NC, H_out, W_out), x.dtype),
        grid_spec=pltpu.PrefetchScalarGridSpec(
            num_scalar_prefetch=0,
            grid=(num_blocks,),
            in_specs=[pl.BlockSpec((cb, H, W), lambda i: (i, 0, 0))],
            out_specs=pl.BlockSpec((cb, H_out, W_out), lambda i: (i, 0, 0)),
        ),
        compiler_params=pltpu.CompilerParams(
            dimension_semantics=("parallel",),
            # Above the 16/32 MiB scoped defaults (v5e/v6e/v7x) but below
            # v7x's 64 MiB physical VMEM; our blocks use far less anyway.
            vmem_limit_bytes=48 * 1024 * 1024,
        ),
    )(xf)
    return out.reshape(N, C, H_out, W_out)


def _reference_circular_pad2d(x, padding):
    """Plain-JAX reference matching torch circular-pad semantics."""
    pl_, pr, pt, pb = padding
    _, _, H, W = x.shape
    rows = (jnp.arange(H + pt + pb) - pt) % H
    cols = (jnp.arange(W + pl_ + pr) - pl_) % W
    return x[:, :, rows, :][:, :, :, cols]


if __name__ == "__main__":
    key = jax.random.PRNGKey(0)
    x = jax.random.normal(key, (2, 4, 16, 16), dtype=jnp.float32)

    # Default symmetric padding (as in the PyTorch module's default).
    padding = (1, 1, 1, 1)  # (left, right, top, bottom)
    out = jax.block_until_ready(circular_pad2d(x, padding))
    ref = _reference_circular_pad2d(x, padding)
    assert out.shape == (2, 4, 18, 18), out.shape
    assert jnp.allclose(out, ref), "mismatch vs reference circular pad (1,1,1,1)"

    # Asymmetric padding with a zero component (exercises all band branches).
    padding2 = (2, 1, 0, 3)
    out2 = jax.block_until_ready(circular_pad2d(x, padding2))
    ref2 = _reference_circular_pad2d(x, padding2)
    assert out2.shape == (2, 4, 19, 19), out2.shape
    assert jnp.allclose(out2, ref2), "mismatch vs reference circular pad (2,1,0,3)"

    # Padding only on the left/right (no vertical bands).
    padding3 = (3, 2, 0, 0)
    out3 = jax.block_until_ready(circular_pad2d(x, padding3))
    ref3 = _reference_circular_pad2d(x, padding3)
    assert out3.shape == (2, 4, 16, 21), out3.shape
    assert jnp.allclose(out3, ref3), "mismatch vs reference circular pad (3,2,0,0)"

    print("KERNEL_OK")
</pallas_src>

<mosaic_0001>
module attributes {stable_mosaic.version = 11 : i64} {
  func.func @_circular_pad_kernel(%arg0: i32, %arg1: memref<4x16x16xf32, #tpu.memory_space<vmem>>, %arg2: memref<4x18x18xf32, #tpu.memory_space<vmem>>) attributes {dimension_semantics = [#tpu.dimension_semantics<parallel>], iteration_bounds = array<i64: 2>, scalar_prefetch = 0 : i64, scratch_operands = 0 : i64, tpu.core_type = #tpu.core_type<tc>, window_params = [{transform_indices = @transform_0, window_bounds = array<i64: 4, 16, 16>}, {transform_indices = @transform_1, window_bounds = array<i64: 4, 18, 18>}]} {
    %c0 = arith.constant 0 : index
    %c0_0 = arith.constant 0 : index
    %c0_1 = arith.constant 0 : index
    %0 = vector.load %arg1[%c0, %c0_0, %c0_1] : memref<4x16x16xf32, #tpu.memory_space<vmem>>, vector<4x16x16xf32>
    %c0_2 = arith.constant 0 : index
    %c1 = arith.constant 1 : index
    %c1_3 = arith.constant 1 : index
    %1 = vector.load %arg2[%c0_2, %c1, %c1_3] : memref<4x18x18xf32, #tpu.memory_space<vmem>>, vector<4x16x16xf32>
    tpu.vector_store %arg2[%c0_2, %c1, %c1_3], %0 {strides = array<i32>} : memref<4x18x18xf32, #tpu.memory_space<vmem>>, vector<4x16x16xf32>,
    %c0_4 = arith.constant 0 : index
    %c0_5 = arith.constant 0 : index
    %c15 = arith.constant 15 : index
    %2 = vector.load %arg1[%c0_4, %c0_5, %c15] : memref<4x16x16xf32, #tpu.memory_space<vmem>>, vector<4x16x1xf32>
    %c0_6 = arith.constant 0 : index
    %c1_7 = arith.constant 1 : index
    %c0_8 = arith.constant 0 : index
    %3 = vector.load %arg2[%c0_6, %c1_7, %c0_8] : memref<4x18x18xf32, #tpu.memory_space<vmem>>, vector<4x16x1xf32>
    tpu.vector_store %arg2[%c0_6, %c1_7, %c0_8], %2 {strides = array<i32>} : memref<4x18x18xf32, #tpu.memory_space<vmem>>, vector<4x16x1xf32>,
    %c0_9 = arith.constant 0 : index
    %c0_10 = arith.constant 0 : index
    %c0_11 = arith.constant 0 : index
    %4 = vector.load %arg1[%c0_9, %c0_10, %c0_11] : memref<4x16x16xf32, #tpu.memory_space<vmem>>, vector<4x16x1xf32>
    %c0_12 = arith.constant 0 : index
    %c1_13 = arith.constant 1 : index
    %c17 = arith.constant 17 : index
    %5 = vector.load %arg2[%c0_12, %c1_13, %c17] : memref<4x18x18xf32, #tpu.memory_space<vmem>>, vector<4x16x1xf32>
    tpu.vector_store %arg2[%c0_12, %c1_13, %c17], %4 {strides = array<i32>} : memref<4x18x18xf32, #tpu.memory_space<vmem>>, vector<4x16x1xf32>,
    %c0_14 = arith.constant 0 : index
    %c15_15 = arith.constant 15 : index
    %c0_16 = arith.constant 0 : index
    %6 = vector.load %arg1[%c0_14, %c15_15, %c0_16] : memref<4x16x16xf32, #tpu.memory_space<vmem>>, vector<4x1x16xf32>
    %7 = vector.extract_strided_slice %6 {offsets = [0, 0, 15], sizes = [4, 1, 1], strides = [1, 1, 1]} : vector<4x1x16xf32> to vector<4x1x1xf32>
    %8 = vector.extract_strided_slice %6 {offsets = [0, 0, 0], sizes = [4, 1, 1], strides = [1, 1, 1]} : vector<4x1x16xf32> to vector<4x1x1xf32>
    %9 = tpu.concatenate %7, %6, %8 in 2 : vector<4x1x1xf32>, vector<4x1x16xf32>, vector<4x1x1xf32> -> vector<4x1x18xf32>
    %c0_17 = arith.constant 0 : index
    %c0_18 = arith.constant 0 : index
    %c0_19 = arith.constant 0 : index
    %10 = vector.load %arg2[%c0_17, %c0_18, %c0_19] : memref<4x18x18xf32, #tpu.memory_space<vmem>>, vector<4x1x18xf32>
    tpu.vector_store %arg2[%c0_17, %c0_18, %c0_19], %9 {strides = array<i32>} : memref<4x18x18xf32, #tpu.memory_space<vmem>>, vector<4x1x18xf32>,
    %c0_20 = arith.constant 0 : index
    %c0_21 = arith.constant 0 : index
    %c0_22 = arith.constant 0 : index
    %11 = vector.load %arg1[%c0_20, %c0_21, %c0_22] : memref<4x16x16xf32, #tpu.memory_space<vmem>>, vector<4x1x16xf32>
    %12 = vector.extract_strided_slice %11 {offsets = [0, 0, 15], sizes = [4, 1, 1], strides = [1, 1, 1]} : vector<4x1x16xf32> to vector<4x1x1xf32>
    %13 = vector.extract_strided_slice %11 {offsets = [0, 0, 0], sizes = [4, 1, 1], strides = [1, 1, 1]} : vector<4x1x16xf32> to vector<4x1x1xf32>
    %14 = tpu.concatenate %12, %11, %13 in 2 : vector<4x1x1xf32>, vector<4x1x16xf32>, vector<4x1x1xf32> -> vector<4x1x18xf32>
    %c0_23 = arith.constant 0 : index
    %c17_24 = arith.constant 17 : index
    %c0_25 = arith.constant 0 : index
    %15 = vector.load %arg2[%c0_23, %c17_24, %c0_25] : memref<4x18x18xf32, #tpu.memory_space<vmem>>, vector<4x1x18xf32>
    tpu.vector_store %arg2[%c0_23, %c17_24, %c0_25], %14 {strides = array<i32>} : memref<4x18x18xf32, #tpu.memory_space<vmem>>, vector<4x1x18xf32>,
    return
  }
  func.func @transform_0(%arg0: i32) -> (i32, i32, i32) {
    %c0_i32 = arith.constant 0 : i32
    %c0_i32_0 = arith.constant 0 : i32
    %c0_i32_1 = arith.constant 0 : i32
    return %arg0, %c0_i32, %c0_i32_0 : i32, i32, i32
  }
  func.func @transform_1(%arg0: i32) -> (i32, i32, i32) {
    %c0_i32 = arith.constant 0 : i32
    %c0_i32_0 = arith.constant 0 : i32
    %c0_i32_1 = arith.constant 0 : i32
    return %arg0, %c0_i32, %c0_i32_0 : i32, i32, i32
  }
}

</mosaic_0001>

<llo_original>
// kernel: tpu_custom_call.1
$region0: #{tpu_custom_call.1}
  #allocation0 [shape = 'u32[]', space=smem, size = 0x4, offset = 0x4, fixed_abs, tag = 'smem constant byte address 0x4 - core index']
  #allocation1 [shape = 'u32[72,128]{1,0:T(1,128)}', space=vmem, size = 0x9000, scoped, tag = 'internal scratch']
  %s0 = inlined_call_operand.hbm [shape: f32[8,16,16], index: 0, kind: input, shape index: {}]
  %s1 = inlined_call_operand.vmem [shape: f32[8,18,18], index: 1, kind: output, shape index: {}]
  %s2 = sld [smem:[#allocation0]]
  $region41: #{tpu_custom_call.1} parent=0
    _
  %s4 = ssub.s32 1, %s2
  %s5 = scalar_select 0, %s4, %s2
  $region1: #{tpu_custom_call.1} parent=0
    #allocation2 [shape = 'u8[65536]{0}', space=vmem, size = 0x10000, scoped, tag = 'input window, operand 0']
    #allocation3 [shape = 's32[2]{0}', space=sflag, size = 0x8, scoped, tag = 'scoped memory for tpu_custom_call.1']
    %6 = vsyncpa [#allocation3], 0
    %s7 = scalar_lea.sflag [#allocation3], 1
    %8 = vsyncpa %s7, 0
    loop: start=0, step=1, limit=4
    $region2: #{tpu_custom_call.1} parent=1 // loop_pre_header
      _
    $region3: #{tpu_custom_call.1} parent=1 // loop_header
      %s10 = sphi 0, %s14
      %p11 = scmp.ge.s32.totalorder %s10, 4
      %s20 = sphi 0, %s22
      %s23 = sphi 0, %s20
      %s24 = sphi 0, %s23
      %s40 = sphi 0, %s24
      %s46 = sphi 0, %s48
      %s49 = sphi 0, %s46
      %s50 = sphi 0, %s49
      %s66 = sphi 0, %s50
    $region4: #{tpu_custom_call.1} parent=1 // loop_header_branch
      %13 = sbr.rel (%p11) target = $region8
    $region5: #{tpu_custom_call.1} parent=1 // loop_body
      %s15 = ssub.s32 %s10, 1
      %s16 = ssub.s32 %s10, 2
      %s17 = sadd.s32 %s10, 1
      %s18 = ssub.s32 %s10, %s17
      %p19 = scmp.eq.s32.totalorder %s18, 0
      %s21 = sadd.s32 %s20, 1
      %s22 = scalar_select %p19, %s20, %s21
      %p25 = pneg %p19
      %p26 = scmp.eq.s32.totalorder %s10, 1
      %p27 = por %p25, %p26
      %p28 = scmp.ne.s32.totalorder %s20, %s23
      %p29 = scmp.eq.s32.totalorder %s10, 0
      %p30 = por %p28, %p29
      %p31 = scmp.ne.s32.totalorder %s20, %s23
      %p32 = scmp.eq.s32.totalorder %s15, 1
      %p33 = por %p31, %p32
      %p34 = scmp.ne.s32.totalorder %s23, %s24
      %p35 = scmp.eq.s32.totalorder %s15, 0
      %p36 = por %p34, %p35
      %p37 = scmp.ne.s32.totalorder %s23, %s24
      %p38 = scmp.eq.s32.totalorder %s16, 1
      %p39 = por %p37, %p38
      %p41 = scmp.ne.s32.totalorder %s24, %s40
      %p42 = scmp.eq.s32.totalorder %s16, 0
      %p43 = por %p41, %p42
      %s44 = ssub.s32 %s10, %s17
      %p45 = scmp.eq.s32.totalorder %s44, 0
      %s47 = sadd.s32 %s46, 1
      %s48 = scalar_select %p45, %s46, %s47
      %p51 = pneg %p45
      %p52 = scmp.eq.s32.totalorder %s10, 1
      %p53 = por %p51, %p52
      %p54 = scmp.ne.s32.totalorder %s46, %s49
      %p55 = scmp.eq.s32.totalorder %s10, 0
      %p56 = por %p54, %p55
      %p57 = scmp.ne.s32.totalorder %s46, %s49
      %p58 = scmp.eq.s32.totalorder %s15, 1
      %p59 = por %p57, %p58
      %p60 = scmp.ne.s32.totalorder %s49, %s50
      %p61 = scmp.eq.s32.totalorder %s15, 0
      %p62 = por %p60, %p61
      %p63 = scmp.ne.s32.totalorder %s49, %s50
      %p64 = scmp.eq.s32.totalorder %s16, 1
      %p65 = por %p63, %p64
      %p67 = scmp.ne.s32.totalorder %s50, %s66
      %p68 = scmp.eq.s32.totalorder %s16, 0
      %p69 = por %p67, %p68
      %p70 = scmp.le.s32.totalorder 1, %s10
      %p71 = scmp.lt.s32.totalorder %s10, 3
      %p72 = pnand %p70, %p71
      %p73 = pneg %p72
      // Predicated region
      $region9: #{tpu_custom_call.1} parent=5 // pred_check
        _
      $region10: #{tpu_custom_call.1} parent=5 // pred_check_branch
        %75 = sbr.rel (%p72) target = $region12
      $region11: #{tpu_custom_call.1} parent=5 // pred_region
        %s76 = ssub.s32 %s10, 1
      $region12: #{tpu_custom_call.1} parent=5 // pred_fallthru
        _
      %p77 = scmp.lt.s32.totalorder %s10, 2
      // Predicated region
      $region13: #{tpu_custom_call.1} parent=5 // pred_check
        %p78 = pneg %p77
      $region14: #{tpu_custom_call.1} parent=5 // pred_check_branch
        %80 = sbr.rel (%p78) target = $region16
      $region15: #{tpu_custom_call.1} parent=5 // pred_region
        // Predicated region
        $region17: #{tpu_custom_call.1} parent=15 // pred_check
          %p81 = pneg %p30
        $region18: #{tpu_custom_call.1} parent=15 // pred_check_branch
          %83 = sbr.rel (%p81) target = $region20
        $region19: #{tpu_custom_call.1} parent=15 // pred_region
          %s84 = sand.u32 %s20, 1
          %s85 = scalar_lea.sflag [#allocation3], %s84
          %s86 = sand.u32 %s20, 1
          %s87 = smul.addr %s86, 64
          %s88 = scalar_lea.vmem [#allocation2], %s87
          %s89 = smul.u32 4, %s10
          %91 = vsyncadd %s85, 0
          %s92 = smul.addr %s89, 2
          %s93 = smul.addr %s92, 8
          %s94 = scalar_lea.hbm %s0, %s93
          %s95 = sshll.u32 %s94, 4
          %s96 = int_to_ptr.hbm [resolvable:$true] %s95
          %s97 = sshll.u32 %s88, 4
          %s98 = int_to_ptr.vmem [resolvable:$true] %s97
          %103 = dma.hbm_to_vmem [thread:$0]  %s96, 1024, %s98, %s85, 128, 128, 8
        $region20: #{tpu_custom_call.1} parent=15 // pred_fallthru
          _
      $region16: #{tpu_custom_call.1} parent=5 // pred_fallthru
        _
      %p104 = scmp.le.s32.totalorder 1, %s10
      %p105 = scmp.lt.s32.totalorder %s10, 3
      %p106 = pnand %p104, %p105
      %p107 = pneg %p106
      // Predicated region
      $region21: #{tpu_custom_call.1} parent=5 // pred_check
        _
      $region22: #{tpu_custom_call.1} parent=5 // pred_check_branch
        %109 = sbr.rel (%p106) target = $region24
      $region23: #{tpu_custom_call.1} parent=5 // pred_region
        %s110 = ssub.s32 %s10, 1
        %s111 = sand.u32 %s23, 1
        %s112 = scalar_lea.sflag [#allocation3], %s111
        %s113 = sand.u32 %s23, 1
        %s114 = smul.addr %s113, 64
        %s115 = scalar_lea.vmem [#allocation2], %s114
        // Predicated region
        $region25: #{tpu_custom_call.1} parent=23 // pred_check
          %p116 = pneg %p36
        $region26: #{tpu_custom_call.1} parent=23 // pred_check_branch
          %118 = sbr.rel (%p116) target = $region28
        $region27: #{tpu_custom_call.1} parent=23 // pred_region
          %120 = dma.done %s112, 1024
        $region28: #{tpu_custom_call.1} parent=23 // pred_fallthru
          _
        %s121 = sand.u32 %s23, 1
        %s122 = scalar_lea.sflag [#allocation3], %s121
        %s123 = sand.u32 %s23, 1
        %s124 = smul.addr %s123, 64
        %s125 = scalar_lea.vmem [#allocation2], %s124
        %p126 = pneg %p36
        %p127 = pneg %p33
        %p128 = pneg %p62
        %p129 = pneg %p59
        %s130 = smul.u32 4, %s15
        %p131 = scmp.lt.s32.totalorder %s130, 7
        %s132 = scalar_select %p131, %s130, 7
        %s133 = smul.addr %s132, 3
        %s134 = smul.addr %s133, 8
        %s135 = scalar_lea.vmem %s1, %s134
        %s136 = smul.u32 4, %s15
        %s137 = smul.u32 4, %s15
        %p138 = scmp.lt.s32.totalorder %s137, 7
        %s139 = scalar_select %p138, %s137, 7
        %s140 = smul.addr %s139, 3
        %s141 = smul.addr %s140, 8
        %s142 = scalar_lea.vmem %s1, %s141
        %s143 = smul.u32 4, %s15
        %v144 = vld [vmem:[%s115] sm:$0xff]
        %v145 = vld [vmem:[%s115 + $0x8] sm:$0xff]
        %v146 = vld [vmem:[%s115 + $0x10] sm:$0xff]
        %v147 = vld [vmem:[%s115 + $0x18] sm:$0xff]
        %v148 = vld [vmem:[%s115 + $0x20] sm:$0xff]
        %v149 = vld [vmem:[%s115 + $0x28] sm:$0xff]
        %v150 = vld [vmem:[%s115 + $0x30] sm:$0xff]
        %v151 = vld [vmem:[%s115 + $0x38] sm:$0xff]
        %160 = vrot.lane.b32.xlu0 %v144, 1
        %v161 = vpop.permute.xlu0 %160
        %162 = vrot.lane.b32.xlu0 %v145, 1
        %v163 = vpop.permute.xlu0 %162
        %164 = vrot.lane.b32.xlu0 %v146, 1
        %v165 = vpop.permute.xlu0 %164
        %166 = vrot.lane.b32.xlu0 %v147, 1
        %v167 = vpop.permute.xlu0 %166
        %168 = vrot.lane.b32.xlu0 %v148, 1
        %v169 = vpop.permute.xlu0 %168
        %170 = vrot.lane.b32.xlu0 %v149, 1
        %v171 = vpop.permute.xlu0 %170
        %172 = vrot.lane.b32.xlu0 %v150, 1
        %v173 = vpop.permute.xlu0 %172
        %174 = vrot.lane.b32.xlu0 %v151, 1
        %v175 = vpop.permute.xlu0 %174
        %vm184 = vcmask 138248
        %185 = vst.msk [vmem:[%s142 + $0x1] sm:$0xff] %vm184, %v161
        %186 = vst.msk [vmem:[%s142 + $0x9] sm:$0xff] %vm184, %v163
        %187 = vst.msk [vmem:[%s142 + $0x19] sm:$0xff] %vm184, %v165
        %188 = vst.msk [vmem:[%s142 + $0x21] sm:$0xff] %vm184, %v167
        %189 = vst.msk [vmem:[%s142 + $0x31] sm:$0xff] %vm184, %v169
        %190 = vst.msk [vmem:[%s142 + $0x39] sm:$0xff] %vm184, %v171
        %191 = vst.msk [vmem:[%s142 + $0x49] sm:$0xff] %vm184, %v173
        %192 = vst.msk [vmem:[%s142 + $0x51] sm:$0xff] %vm184, %v175
        %v193 = vld [vmem:[%s115] sm:$0xff]
        %v194 = vld [vmem:[%s115 + $0x8] sm:$0xff]
        %v195 = vld [vmem:[%s115 + $0x10] sm:$0xff]
        %v196 = vld [vmem:[%s115 + $0x18] sm:$0xff]
        %v197 = vld [vmem:[%s115 + $0x20] sm:$0xff]
        %v198 = vld [vmem:[%s115 + $0x28] sm:$0xff]
        %v199 = vld [vmem:[%s115 + $0x30] sm:$0xff]
        %v200 = vld [vmem:[%s115 + $0x38] sm:$0xff]
        %209 = vrot.lane.b32.xlu0 %v193, 113
        %v210 = vpop.permute.xlu0 %209
        %211 = vrot.lane.b32.xlu0 %v194, 113
        %v212 = vpop.permute.xlu0 %211
        %213 = vrot.lane.b32.xlu0 %v195, 113
        %v214 = vpop.permute.xlu0 %213
        %215 = vrot.lane.b32.xlu0 %v196, 113
        %v216 = vpop.permute.xlu0 %215
        %217 = vrot.lane.b32.xlu0 %v197, 113
        %v218 = vpop.permute.xlu0 %217
        %219 = vrot.lane.b32.xlu0 %v198, 113
        %v220 = vpop.permute.xlu0 %219
        %221 = vrot.lane.b32.xlu0 %v199, 113
        %v222 = vpop.permute.xlu0 %221
        %223 = vrot.lane.b32.xlu0 %v200, 113
        %v224 = vpop.permute.xlu0 %223
        %vm233 = vcmask 7168
        %234 = vst.msk [vmem:[%s142 + $0x1] sm:$0xff] %vm233, %v210
        %235 = vst.msk [vmem:[%s142 + $0x9] sm:$0xff] %vm233, %v212
        %236 = vst.msk [vmem:[%s142 + $0x19] sm:$0xff] %vm233, %v214
        %237 = vst.msk [vmem:[%s142 + $0x21] sm:$0xff] %vm233, %v216
        %238 = vst.msk [vmem:[%s142 + $0x31] sm:$0xff] %vm233, %v218
        %239 = vst.msk [vmem:[%s142 + $0x39] sm:$0xff] %vm233, %v220
        %240 = vst.msk [vmem:[%s142 + $0x49] sm:$0xff] %vm233, %v222
        %241 = vst.msk [vmem:[%s142 + $0x51] sm:$0xff] %vm233, %v224
        %v242 = vld [vmem:[%s115] sm:$0xff]
        %v243 = vld [vmem:[%s115 + $0x8] sm:$0xff]
        %v244 = vld [vmem:[%s115 + $0x10] sm:$0xff]
        %v245 = vld [vmem:[%s115 + $0x18] sm:$0xff]
        %v246 = vld [vmem:[%s115 + $0x20] sm:$0xff]
        %v247 = vld [vmem:[%s115 + $0x28] sm:$0xff]
        %v248 = vld [vmem:[%s115 + $0x30] sm:$0xff]
        %v249 = vld [vmem:[%s115 + $0x38] sm:$0xff]
        %258 = vrot.lane.b32.xlu0 %v242, 17
        %v259 = vpop.permute.xlu0 %258
        %260 = vrot.lane.b32.xlu0 %v243, 17
        %v261 = vpop.permute.xlu0 %260
        %262 = vrot.lane.b32.xlu0 %v244, 17
        %v263 = vpop.permute.xlu0 %262
        %264 = vrot.lane.b32.xlu0 %v245, 17
        %v265 = vpop.permute.xlu0 %264
        %266 = vrot.lane.b32.xlu0 %v246, 17
        %v267 = vpop.permute.xlu0 %266
        %268 = vrot.lane.b32.xlu0 %v247, 17
        %v269 = vpop.permute.xlu0 %268
        %270 = vrot.lane.b32.xlu0 %v248, 17
        %v271 = vpop.permute.xlu0 %270
        %272 = vrot.lane.b32.xlu0 %v249, 17
        %v273 = vpop.permute.xlu0 %272
        %vm282 = vcmask 146568
        %283 = vst.msk [vmem:[%s142 + $0x1] sm:$0xff] %vm282, %v259
        %284 = vst.msk [vmem:[%s142 + $0x9] sm:$0xff] %vm282, %v261
        %285 = vst.msk [vmem:[%s142 + $0x19] sm:$0xff] %vm282, %v263
        %286 = vst.msk [vmem:[%s142 + $0x21] sm:$0xff] %vm282, %v265
        %287 = vst.msk [vmem:[%s142 + $0x31] sm:$0xff] %vm282, %v267
        %288 = vst.msk [vmem:[%s142 + $0x39] sm:$0xff] %vm282, %v269
        %289 = vst.msk [vmem:[%s142 + $0x49] sm:$0xff] %vm282, %v271
        %290 = vst.msk [vmem:[%s142 + $0x51] sm:$0xff] %vm282, %v273
        %v291 = vld [vmem:[%s115 + $0xf] sm:$0x1]
        %v292 = vld [vmem:[%s115 + $0x1f] sm:$0x1]
        %v293 = vld [vmem:[%s115 + $0x2f] sm:$0x1]
        %v294 = vld [vmem:[%s115 + $0x3f] sm:$0x1]
        %299 = vrot.lane.b32.xlu0 %v291, 113
        %v300 = vpop.permute.xlu0 %299
        %301 = vrot.lane.b32.xlu0 %v292, 113
        %v302 = vpop.permute.xlu0 %301
        %303 = vrot.lane.b32.xlu0 %v293, 113
        %v304 = vpop.permute.xlu0 %303
        %305 = vrot.lane.b32.xlu0 %v294, 113
        %v306 = vpop.permute.xlu0 %305
        %311 = vrot.lane.b32.xlu0 %v291, 1
        %v312 = vpop.permute.xlu0 %311
        %313 = vrot.lane.b32.xlu0 %v292, 1
        %v314 = vpop.permute.xlu0 %313
        %315 = vrot.lane.b32.xlu0 %v293, 1
        %v316 = vpop.permute.xlu0 %315
        %317 = vrot.lane.b32.xlu0 %v294, 1
        %v318 = vpop.permute.xlu0 %317
        %323 = vrot.lane.b32.xlu0 %v291, 17
        %v324 = vpop.permute.xlu0 %323
        %325 = vrot.lane.b32.xlu0 %v292, 17
        %v326 = vpop.permute.xlu0 %325
        %327 = vrot.lane.b32.xlu0 %v293, 17
        %v328 = vpop.permute.xlu0 %327
        %329 = vrot.lane.b32.xlu0 %v294, 17
        %v330 = vpop.permute.xlu0 %329
        %v335 = vsel %vm233, %v300, %v312
        %v336 = vsel %vm233, %v302, %v314
        %v337 = vsel %vm233, %v304, %v316
        %v338 = vsel %vm233, %v306, %v318
        %vm339 = vcmask 138240
        %v340 = vsel %vm339, %v335, %v324
        %v341 = vsel %vm339, %v336, %v326
        %v342 = vsel %vm339, %v337, %v328
        %v343 = vsel %vm339, %v338, %v330
        %vm344 = vcmask 139264
        %345 = vst.msk [vmem:[%s142] sm:$0x1] %vm344, %v340
        %346 = vst.msk [vmem:[%s142 + $0x18] sm:$0x1] %vm344, %v341
        %347 = vst.msk [vmem:[%s142 + $0x30] sm:$0x1] %vm344, %v342
        %348 = vst.msk [vmem:[%s142 + $0x48] sm:$0x1] %vm344, %v343
        %v349 = vld [vmem:[%s115] sm:$0x1]
        %v350 = vld [vmem:[%s115 + $0x10] sm:$0x1]
        %v351 = vld [vmem:[%s115 + $0x20] sm:$0x1]
        %v352 = vld [vmem:[%s115 + $0x30] sm:$0x1]
        %357 = vrot.lane.b32.xlu0 %v349, 113
        %v358 = vpop.permute.xlu0 %357
        %359 = vrot.lane.b32.xlu0 %v350, 113
        %v360 = vpop.permute.xlu0 %359
        %361 = vrot.lane.b32.xlu0 %v351, 113
        %v362 = vpop.permute.xlu0 %361
        %363 = vrot.lane.b32.xlu0 %v352, 113
        %v364 = vpop.permute.xlu0 %363
        %369 = vrot.lane.b32.xlu0 %v349, 1
        %v370 = vpop.permute.xlu0 %369
        %371 = vrot.lane.b32.xlu0 %v350, 1
        %v372 = vpop.permute.xlu0 %371
        %373 = vrot.lane.b32.xlu0 %v351, 1
        %v374 = vpop.permute.xlu0 %373
        %375 = vrot.lane.b32.xlu0 %v352, 1
        %v376 = vpop.permute.xlu0 %375
        %381 = vrot.lane.b32.xlu0 %v349, 17
        %v382 = vpop.permute.xlu0 %381
        %383 = vrot.lane.b32.xlu0 %v350, 17
        %v384 = vpop.permute.xlu0 %383
        %385 = vrot.lane.b32.xlu0 %v351, 17
        %v386 = vpop.permute.xlu0 %385
        %387 = vrot.lane.b32.xlu0 %v352, 17
        %v388 = vpop.permute.xlu0 %387
        %v393 = vsel %vm233, %v358, %v370
        %v394 = vsel %vm233, %v360, %v372
        %v395 = vsel %vm233, %v362, %v374
        %v396 = vsel %vm233, %v364, %v376
        %v397 = vsel %vm339, %v393, %v382
        %v398 = vsel %vm339, %v394, %v384
        %v399 = vsel %vm339, %v395, %v386
        %v400 = vsel %vm339, %v396, %v388
        %401 = vst.msk [vmem:[%s142 + $0x11] sm:$0x1] %vm344, %v397
        %402 = vst.msk [vmem:[%s142 + $0x29] sm:$0x1] %vm344, %v398
        %403 = vst.msk [vmem:[%s142 + $0x41] sm:$0x1] %vm344, %v399
        %404 = vst.msk [vmem:[%s142 + $0x59] sm:$0x1] %vm344, %v400
        %s405 = smul.u32 4, %s15
        %p406 = scmp.lt.s32.totalorder %s405, 7
        %s407 = scalar_select %p406, %s405, 7
        %s408 = smul.addr %s407, 3
        %s409 = smul.addr %s408, 8
        %s410 = scalar_lea.vmem %s1, %s409
        // Predicated region
        $region29: #{tpu_custom_call.1} parent=23 // pred_check
          %p411 = pneg %p59
        $region30: #{tpu_custom_call.1} parent=23 // pred_check_branch
          %413 = sbr.rel (%p411) target = $region32
        $region31: #{tpu_custom_call.1} parent=23 // pred_region
          %s414 = smul.u32 4, %s15
        $region32: #{tpu_custom_call.1} parent=23 // pred_fallthru
          _
      $region24: #{tpu_custom_call.1} parent=5 // pred_fallthru
        _
      %p415 = scmp.le.s32.totalorder 2, %s10
      // Predicated region
      $region33: #{tpu_custom_call.1} parent=5 // pred_check
        %p416 = pneg %p415
      $region34: #{tpu_custom_call.1} parent=5 // pred_check_branch
        %418 = sbr.rel (%p416) target = $region36
      $region35: #{tpu_custom_call.1} parent=5 // pred_region
        %s419 = ssub.s32 %s10, 2
        // Predicated region
        $region37: #{tpu_custom_call.1} parent=35 // pred_check
          %p420 = pneg %p65
        $region38: #{tpu_custom_call.1} parent=35 // pred_check_branch
          %422 = sbr.rel (%p420) target = $region40
        $region39: #{tpu_custom_call.1} parent=35 // pred_region
          %s423 = smul.u32 4, %s16
          %p424 = scmp.lt.s32.totalorder %s423, 7
          %s425 = scalar_select %p424, %s423, 7
          %s426 = smul.addr %s425, 3
          %s427 = smul.addr %s426, 8
          %s428 = scalar_lea.vmem %s1, %s427
        $region40: #{tpu_custom_call.1} parent=35 // pred_fallthru
          _
      $region36: #{tpu_custom_call.1} parent=5 // pred_fallthru
        _
    $region6: #{tpu_custom_call.1} parent=1 // loop_footer
      %s14 = sadd.s32 1, %s10
    $region7: #{tpu_custom_call.1} parent=1 // loop_footer_branch
      %9 = sbr.rel target = $region3
    $region8: #{tpu_custom_call.1} parent=1 // loop_exit
      _
    %429 = vsyncpa [#allocation3], 1
    %s430 = scalar_lea.sflag [#allocation3], 1
    %431 = vsyncpa %s430, 1

</llo_original>
